<compile_context>
chip_gen: v7x
topology: tpu7x:2x2x1
jax: 0.10.0
libtpu: 0.0.40
codegen_flags: <defaults>
</compile_context>

<pallas_src>
import functools

import jax
import jax.numpy as jnp
import numpy as np
from jax.experimental import pallas as pl
from jax.experimental.pallas import tpu as pltpu


def _round_up(n, m):
    return ((n + m - 1) // m) * m


# ----------------------------------------------------------------------------
# Fused Pallas kernel: whole generator trunk + concatenated (pre-fused) heads.
#   refs = (x_ref, w0, b0, w1, b1, ..., w_heads, b_heads, out_ref)
# ----------------------------------------------------------------------------
def _generator_kernel(*refs, num_mlp_layers):
    x_ref = refs[0]
    out_ref = refs[-1]

    h = x_ref[...]  # bf16 (B_tile, z_dim)
    idx = 1
    for _ in range(num_mlp_layers):
        w_ref = refs[idx]
        b_ref = refs[idx + 1]
        idx += 2
        acc = jnp.dot(h, w_ref[...], preferred_element_type=jnp.float32)
        # Bias add + tanh in f32 (safe on v5e/v6e/v7x); padded cols stay 0.
        # Single cast to bf16 so the next matmul feeds the MXU natively.
        h = jnp.tanh(acc + b_ref[...]).astype(jnp.bfloat16)

    wh_ref = refs[idx]
    bh_ref = refs[idx + 1]
    acc = jnp.dot(h, wh_ref[...], preferred_element_type=jnp.float32)
    out_ref[...] = (acc + bh_ref[...]).astype(out_ref.dtype)


def _resident_spec(shape):
    """Weights/biases: constant index_map -> single-buffer them to save VMEM."""
    try:
        return pl.BlockSpec(shape, lambda i: (0, 0), pipeline_mode=pl.Buffered(1))
    except Exception:  # older jax without pipeline_mode / Buffered
        return pl.BlockSpec(shape, lambda i: (0, 0))


def _vmem_bytes_estimate(b_tile, k0, weights, biases):
    w_bytes = sum(int(np.prod(w.shape)) * w.dtype.itemsize for w in weights)
    b_bytes = sum(int(np.prod(b.shape)) * b.dtype.itemsize for b in biases)
    n_out = weights[-1].shape[1]
    max_h = max(int(w.shape[1]) for w in weights)
    x_bytes = 2 * b_tile * k0 * 2          # bf16 input, double-buffered
    out_bytes = 2 * b_tile * n_out * 4     # f32 output, double-buffered
    act_bytes = 3 * b_tile * max_h * 4     # activation temporaries
    return w_bytes + b_bytes + x_bytes + out_bytes + act_bytes


def fused_generator_pallas(x_pad, weights, biases, *, b_tile):
    """x_pad: (B_pad, z_dim) bf16; weights/biases padded, last pair = fused heads."""
    B_pad, K0 = x_pad.shape
    N_out = weights[-1].shape[1]
    assert B_pad % b_tile == 0
    grid = (B_pad // b_tile,)

    in_specs = [pl.BlockSpec((b_tile, K0), lambda i: (i, 0))]
    args = [x_pad]
    for w, b in zip(weights, biases):
        in_specs.append(_resident_spec(w.shape))
        in_specs.append(_resident_spec(b.shape))
        args.append(w)
        args.append(b)

    est = _vmem_bytes_estimate(b_tile, K0, weights, biases)
    vmem_limit = min(max(32 * 1024 * 1024, int(est * 1.5)), 64 * 1024 * 1024)

    kernel = functools.partial(_generator_kernel, num_mlp_layers=len(weights) - 1)
    return pl.pallas_call(
        kernel,
        out_shape=jax.ShapeDtypeStruct((B_pad, N_out), jnp.float32),
        grid=grid,
        in_specs=in_specs,
        out_specs=pl.BlockSpec((b_tile, N_out), lambda i: (i, 0)),
        compiler_params=pltpu.CompilerParams(
            dimension_semantics=("parallel",),
            vmem_limit_bytes=vmem_limit,
        ),
    )(*args)


# ----------------------------------------------------------------------------
# Parameter init (PyTorch nn.Linear-style uniform init, f32 master copies)
# ----------------------------------------------------------------------------
def init_linear(key, fan_in, fan_out):
    kw, kb = jax.random.split(key)
    bound = 1.0 / jnp.sqrt(jnp.float32(fan_in))
    w = jax.random.uniform(kw, (fan_in, fan_out), jnp.float32, -bound, bound)
    b = jax.random.uniform(kb, (fan_out,), jnp.float32, -bound, bound)
    return w, b


def init_generator_params(key, conv_dims, z_dim, vertexes, edges, nodes):
    params = {"mlp": []}
    dims = [z_dim] + list(conv_dims)
    keys = jax.random.split(key, len(conv_dims) + 2)
    for i, (c0, c1) in enumerate(zip(dims[:-1], dims[1:])):
        params["mlp"].append(init_linear(keys[i], c0, c1))
    params["edges_w"], params["edges_b"] = init_linear(
        keys[-2], conv_dims[-1], edges * vertexes * vertexes
    )
    params["nodes_w"], params["nodes_b"] = init_linear(
        keys[-1], conv_dims[-1], vertexes * nodes
    )
    return params


def pack_generator_params(
    params, conv_dims, z_dim, vertexes, edges, nodes, weight_dtype=jnp.bfloat16
):
    """Pad hidden widths to 128, cast weights to bf16, fuse heads into one matmul.

    The edge head is pre-symmetrized and re-ordered to (V, V, E) column order so
    the kernel output is directly `edges_logits` (no post-processing glue).
    """
    dims_pad = [z_dim] + [_round_up(d, 128) for d in conv_dims]

    weights, biases = [], []
    for i, (w, b) in enumerate(params["mlp"]):
        k_pad, n_pad = dims_pad[i], dims_pad[i + 1]
        w_p = jnp.zeros((k_pad, n_pad), jnp.float32)
        w_p = w_p.at[: w.shape[0], : w.shape[1]].set(w)
        b_p = jnp.zeros((1, n_pad), jnp.float32).at[0, : b.shape[0]].set(b)
        weights.append(w_p.astype(weight_dtype))
        biases.append(b_p)

    V, E, N, K = vertexes, edges, nodes, conv_dims[-1]
    # Fold PyTorch post-processing into the edge-head weights (in f32):
    #   (K, E*V*V) -> (K, E, V, V) -> symmetrize over (V, V) -> (K, V, V, E)
    ew = params["edges_w"].reshape(K, E, V, V)
    ew = (ew + jnp.swapaxes(ew, -1, -2)) * 0.5
    ew = jnp.transpose(ew, (0, 2, 3, 1)).reshape(K, V * V * E)
    eb = params["edges_b"].reshape(E, V, V)
    eb = (eb + jnp.swapaxes(eb, -1, -2)) * 0.5
    eb = jnp.transpose(eb, (1, 2, 0)).reshape(V * V * E)

    # Fused heads: [edges(V,V,E order) | nodes | zero-pad] -> lane-dense width.
    n_edges = E * V * V
    n_nodes = V * N
    k_last = dims_pad[-1]
    n_heads = _round_up(n_edges + n_nodes, 128)
    wh = jnp.zeros((k_last, n_heads), jnp.float32)
    wh = wh.at[:K, :n_edges].set(ew)
    wh = wh.at[:K, n_edges : n_edges + n_nodes].set(params["nodes_w"])
    bh = jnp.zeros((1, n_heads), jnp.float32)
    bh = bh.at[0, :n_edges].set(eb)
    bh = bh.at[0, n_edges : n_edges + n_nodes].set(params["nodes_b"])
    weights.append(wh.astype(weight_dtype))
    biases.append(bh)
    return weights, biases


# ----------------------------------------------------------------------------
# Batch tiling: large tiles (amortize ~0.35us/step), >= 2 steps when the batch
# allows it so the "parallel" axis can shard across v7x's two TensorCores.
# ----------------------------------------------------------------------------
def _choose_batch_tile(B):
    b_pad = _round_up(max(B, 1), 8)
    if b_pad >= 16:
        tile = min(512, _round_up((b_pad + 1) // 2, 8))
    else:
        tile = b_pad
    b_pad = _round_up(b_pad, tile)
    return b_pad, tile


# ----------------------------------------------------------------------------
# Generator forward: single fused Pallas call; output is final (slice+reshape).
# ----------------------------------------------------------------------------
def generator_forward(x, weights, biases, *, vertexes, edges, nodes):
    B, _ = x.shape
    b_pad, b_tile = _choose_batch_tile(B)

    x_pad = jnp.pad(x, ((0, b_pad - B), (0, 0))).astype(jnp.bfloat16)
    out = fused_generator_pallas(x_pad, weights, biases, b_tile=b_tile)

    n_edges = edges * vertexes * vertexes
    n_nodes = vertexes * nodes
    # Head weights were packed pre-symmetrized in (V, V, E) column order, so the
    # kernel output is already edges_logits / nodes_logits: just slice+reshape.
    edges_logits = out[:B, :n_edges].reshape(B, vertexes, vertexes, edges)
    nodes_logits = out[:B, n_edges : n_edges + n_nodes].reshape(B, vertexes, nodes)
    # TODO(synk): nn.Dropout is modeled as eval-mode identity (deterministic fwd).
    return edges_logits, nodes_logits


# ----------------------------------------------------------------------------
# Pure-JAX reference (f32, unfused, literal PyTorch semantics) for sanity check.
# ----------------------------------------------------------------------------
def reference_forward(x, params, *, vertexes, edges, nodes):
    h = x
    for (w, b) in params["mlp"]:
        h = jnp.tanh(h @ w + b)
    edges_flat = h @ params["edges_w"] + params["edges_b"]
    nodes_flat = h @ params["nodes_w"] + params["nodes_b"]
    B = x.shape[0]
    e = edges_flat.reshape(B, edges, vertexes, vertexes)
    e = (e + jnp.transpose(e, (0, 1, 3, 2))) * 0.5
    return jnp.transpose(e, (0, 2, 3, 1)), nodes_flat.reshape(B, vertexes, nodes)


# ----------------------------------------------------------------------------
# Demo
# ----------------------------------------------------------------------------
if __name__ == "__main__":
    conv_dims = [32, 64]
    z_dim = 8
    vertexes = 8
    edges = 4
    nodes = 5
    batch = 2

    root = jax.random.PRNGKey(0)
    k_params, k_x = jax.random.split(root)

    params = init_generator_params(k_params, conv_dims, z_dim, vertexes, edges, nodes)
    weights, biases = pack_generator_params(
        params, conv_dims, z_dim, vertexes, edges, nodes
    )
    x = jax.random.normal(k_x, (batch, z_dim), jnp.float32)

    fwd = jax.jit(
        functools.partial(
            generator_forward, vertexes=vertexes, edges=edges, nodes=nodes
        )
    )
    edges_logits, nodes_logits = fwd(x, weights, biases)
    jax.block_until_ready((edges_logits, nodes_logits))

    assert edges_logits.shape == (batch, vertexes, vertexes, edges)
    assert nodes_logits.shape == (batch, vertexes, nodes)
    # Symmetry of edge logits over the (V, V) axes (exact: identical columns).
    assert jnp.allclose(
        edges_logits, jnp.transpose(edges_logits, (0, 2, 1, 3)), atol=1e-6
    )
    # Numeric check vs f32 reference (bf16 weights -> loose tolerance).
    e_ref, n_ref = reference_forward(
        x, params, vertexes=vertexes, edges=edges, nodes=nodes
    )
    assert float(jnp.max(jnp.abs(edges_logits - e_ref))) < 5e-2
    assert float(jnp.max(jnp.abs(nodes_logits - n_ref))) < 5e-2

    print("KERNEL_OK")
</pallas_src>

<mosaic_0001>
module attributes {stable_mosaic.version = 11 : i64} {
  func.func @_generator_kernel(%arg0: i32, %arg1: memref<8x8xbf16, #tpu.memory_space<vmem>>, %arg2: memref<8x128xbf16, #tpu.memory_space<vmem>>, %arg3: memref<1x128xf32, #tpu.memory_space<vmem>>, %arg4: memref<128x128xbf16, #tpu.memory_space<vmem>>, %arg5: memref<1x128xf32, #tpu.memory_space<vmem>>, %arg6: memref<128x384xbf16, #tpu.memory_space<vmem>>, %arg7: memref<1x384xf32, #tpu.memory_space<vmem>>, %arg8: memref<8x384xf32, #tpu.memory_space<vmem>>) attributes {dimension_semantics = [#tpu.dimension_semantics<parallel>], iteration_bounds = array<i64: 1>, scalar_prefetch = 0 : i64, scratch_operands = 0 : i64, tpu.core_type = #tpu.core_type<tc>, window_params = [{transform_indices = @transform_0, window_bounds = array<i64: 8, 8>}, {pipeline_mode = #tpu.pipeline_mode<synchronous>, transform_indices = @transform_1, window_bounds = array<i64: 8, 128>}, {pipeline_mode = #tpu.pipeline_mode<synchronous>, transform_indices = @transform_2, window_bounds = array<i64: 1, 128>}, {pipeline_mode = #tpu.pipeline_mode<synchronous>, transform_indices = @transform_3, window_bounds = array<i64: 128, 128>}, {pipeline_mode = #tpu.pipeline_mode<synchronous>, transform_indices = @transform_4, window_bounds = array<i64: 1, 128>}, {pipeline_mode = #tpu.pipeline_mode<synchronous>, transform_indices = @transform_5, window_bounds = array<i64: 128, 384>}, {pipeline_mode = #tpu.pipeline_mode<synchronous>, transform_indices = @transform_6, window_bounds = array<i64: 1, 384>}, {transform_indices = @transform_7, window_bounds = array<i64: 8, 384>}]} {
    %c0 = arith.constant 0 : index
    %c0_0 = arith.constant 0 : index
    %0 = vector.load %arg1[%c0, %c0_0] : memref<8x8xbf16, #tpu.memory_space<vmem>>, vector<8x8xbf16>
    %c0_1 = arith.constant 0 : index
    %c0_2 = arith.constant 0 : index
    %1 = vector.load %arg2[%c0_1, %c0_2] : memref<8x128xbf16, #tpu.memory_space<vmem>>, vector<8x128xbf16>
    %cst = arith.constant dense<0.000000e+00> : vector<8x128xf32>
    %2 = tpu.matmul %0, %1, %cst {dimension_numbers = #tpu.dot_dimension_numbers<[1], [0], [0], [1], [0, 0, 1, 1], [], []>} : vector<8x8xbf16>, vector<8x128xbf16>, vector<8x128xf32> -> vector<8x128xf32>
    %c0_3 = arith.constant 0 : index
    %c0_4 = arith.constant 0 : index
    %3 = vector.load %arg3[%c0_3, %c0_4] : memref<1x128xf32, #tpu.memory_space<vmem>>, vector<1x128xf32>
    %4 = vector.broadcast %3 : vector<1x128xf32> to vector<8x128xf32>
    %5 = arith.addf %2, %4 : vector<8x128xf32>
    %6 = math.tanh %5 : vector<8x128xf32>
    %7 = arith.truncf %6 : vector<8x128xf32> to vector<8x128xbf16>
    %c0_5 = arith.constant 0 : index
    %c0_6 = arith.constant 0 : index
    %8 = vector.load %arg4[%c0_5, %c0_6] : memref<128x128xbf16, #tpu.memory_space<vmem>>, vector<128x128xbf16>
    %cst_7 = arith.constant dense<0.000000e+00> : vector<8x128xf32>
    %9 = tpu.matmul %7, %8, %cst_7 {dimension_numbers = #tpu.dot_dimension_numbers<[1], [0], [0], [1], [0, 0, 1, 1], [], []>} : vector<8x128xbf16>, vector<128x128xbf16>, vector<8x128xf32> -> vector<8x128xf32>
    %c0_8 = arith.constant 0 : index
    %c0_9 = arith.constant 0 : index
    %10 = vector.load %arg5[%c0_8, %c0_9] : memref<1x128xf32, #tpu.memory_space<vmem>>, vector<1x128xf32>
    %11 = vector.broadcast %10 : vector<1x128xf32> to vector<8x128xf32>
    %12 = arith.addf %9, %11 : vector<8x128xf32>
    %13 = math.tanh %12 : vector<8x128xf32>
    %14 = arith.truncf %13 : vector<8x128xf32> to vector<8x128xbf16>
    %c0_10 = arith.constant 0 : index
    %c0_11 = arith.constant 0 : index
    %15 = vector.load %arg6[%c0_10, %c0_11] : memref<128x384xbf16, #tpu.memory_space<vmem>>, vector<128x384xbf16>
    %cst_12 = arith.constant dense<0.000000e+00> : vector<8x384xf32>
    %16 = tpu.matmul %14, %15, %cst_12 {dimension_numbers = #tpu.dot_dimension_numbers<[1], [0], [0], [1], [0, 0, 1, 1], [], []>} : vector<8x128xbf16>, vector<128x384xbf16>, vector<8x384xf32> -> vector<8x384xf32>
    %c0_13 = arith.constant 0 : index
    %c0_14 = arith.constant 0 : index
    %17 = vector.load %arg7[%c0_13, %c0_14] : memref<1x384xf32, #tpu.memory_space<vmem>>, vector<1x384xf32>
    %18 = vector.broadcast %17 : vector<1x384xf32> to vector<8x384xf32>
    %19 = arith.addf %16, %18 : vector<8x384xf32>
    %c0_15 = arith.constant 0 : index
    %c0_16 = arith.constant 0 : index
    %20 = vector.load %arg8[%c0_15, %c0_16] : memref<8x384xf32, #tpu.memory_space<vmem>>, vector<8x384xf32>
    tpu.vector_store %arg8[%c0_15, %c0_16], %19 {strides = array<i32>} : memref<8x384xf32, #tpu.memory_space<vmem>>, vector<8x384xf32>,
    return
  }
  func.func @transform_0(%arg0: i32) -> (i32, i32) {
    %c0_i32 = arith.constant 0 : i32
    %c0_i32_0 = arith.constant 0 : i32
    return %arg0, %c0_i32 : i32, i32
  }
  func.func @transform_1(%arg0: i32) -> (i32, i32) {
    %c0_i32 = arith.constant 0 : i32
    %c0_i32_0 = arith.constant 0 : i32
    %c0_i32_1 = arith.constant 0 : i32
    return %c0_i32, %c0_i32_0 : i32, i32
  }
  func.func @transform_2(%arg0: i32) -> (i32, i32) {
    %c0_i32 = arith.constant 0 : i32
    %c0_i32_0 = arith.constant 0 : i32
    %c0_i32_1 = arith.constant 0 : i32
    return %c0_i32, %c0_i32_0 : i32, i32
  }
  func.func @transform_3(%arg0: i32) -> (i32, i32) {
    %c0_i32 = arith.constant 0 : i32
    %c0_i32_0 = arith.constant 0 : i32
    %c0_i32_1 = arith.constant 0 : i32
    return %c0_i32, %c0_i32_0 : i32, i32
  }
  func.func @transform_4(%arg0: i32) -> (i32, i32) {
    %c0_i32 = arith.constant 0 : i32
    %c0_i32_0 = arith.constant 0 : i32
    %c0_i32_1 = arith.constant 0 : i32
    return %c0_i32, %c0_i32_0 : i32, i32
  }
  func.func @transform_5(%arg0: i32) -> (i32, i32) {
    %c0_i32 = arith.constant 0 : i32
    %c0_i32_0 = arith.constant 0 : i32
    %c0_i32_1 = arith.constant 0 : i32
    return %c0_i32, %c0_i32_0 : i32, i32
  }
  func.func @transform_6(%arg0: i32) -> (i32, i32) {
    %c0_i32 = arith.constant 0 : i32
    %c0_i32_0 = arith.constant 0 : i32
    %c0_i32_1 = arith.constant 0 : i32
    return %c0_i32, %c0_i32_0 : i32, i32
  }
  func.func @transform_7(%arg0: i32) -> (i32, i32) {
    %c0_i32 = arith.constant 0 : i32
    %c0_i32_0 = arith.constant 0 : i32
    return %arg0, %c0_i32 : i32, i32
  }
}

</mosaic_0001>

<llo_original>
// kernel: generator_forward.1
$region0: #{generator_forward.1}
  #allocation0 [shape = 'u32[]', space=smem, size = 0x4, offset = 0x4, fixed_abs, tag = 'smem constant byte address 0x4 - core index']
  #allocation1 [shape = 'u32[144,128]{1,0:T(1,128)}', space=vmem, size = 0x12000, scoped, tag = 'internal scratch']
  %s0 = inlined_call_operand.vmem [shape: bf16[8,8], index: 0, kind: input, shape index: {}]
  %s1 = inlined_call_operand.vmem [shape: bf16[8,128], index: 1, kind: input, shape index: {}]
  %s2 = inlined_call_operand.vmem [shape: f32[1,128], index: 2, kind: input, shape index: {}]
  %s3 = inlined_call_operand.hbm [shape: bf16[128,128], index: 3, kind: input, shape index: {}]
  %s4 = inlined_call_operand.vmem [shape: f32[1,128], index: 4, kind: input, shape index: {}]
  %s5 = inlined_call_operand.hbm [shape: bf16[128,384], index: 5, kind: input, shape index: {}]
  %s6 = inlined_call_operand.vmem [shape: f32[1,384], index: 6, kind: input, shape index: {}]
  %s7 = inlined_call_operand.vmem [shape: f32[8,384], index: 7, kind: output, shape index: {}]
  %s8 = sld [smem:[#allocation0]]
  $region46: #{generator_forward.1} parent=0
    _
  %s10 = ssub.s32 1, %s8
  %s11 = scalar_select 0, %s10, %s8
  $region1: #{generator_forward.1} parent=0
    #allocation2 [shape = 'u8[32768]{0}', space=vmem, size = 0x8000, scoped, tag = 'input window, operand 3, single buffered']
    #allocation3 [shape = 's32[1]{0}', space=sflag, size = 0x4, scoped, tag = 'scoped memory for generator_forward.1']
    #allocation4 [shape = 'u8[98304]{0}', space=vmem, size = 0x18000, scoped, tag = 'input window, operand 5, single buffered']
    #allocation5 [shape = 's32[1]{0}', space=sflag, size = 0x4, scoped, tag = 'scoped memory for generator_forward.1']
    %12 = vsyncpa [#allocation3], 0
    %13 = vsyncpa [#allocation5], 0
    // Predicated region
    $region2: #{generator_forward.1} parent=1 // pred_check
      _
    $region3: #{generator_forward.1} parent=1 // pred_check_branch
      %15 = sbr.rel (0) target = $region5
    $region4: #{generator_forward.1} parent=1 // pred_region
      _
    $region5: #{generator_forward.1} parent=1 // pred_fallthru
      _
    // Predicated region
    $region6: #{generator_forward.1} parent=1 // pred_check
      _
    $region7: #{generator_forward.1} parent=1 // pred_check_branch
      %17 = sbr.rel (0) target = $region9
    $region8: #{generator_forward.1} parent=1 // pred_region
      _
    $region9: #{generator_forward.1} parent=1 // pred_fallthru
      _
    // Predicated region
    $region10: #{generator_forward.1} parent=1 // pred_check
      _
    $region11: #{generator_forward.1} parent=1 // pred_check_branch
      %19 = sbr.rel (0) target = $region13
    $region12: #{generator_forward.1} parent=1 // pred_region
      _
    $region13: #{generator_forward.1} parent=1 // pred_fallthru
      _
    // Predicated region
    $region14: #{generator_forward.1} parent=1 // pred_check
      _
    $region15: #{generator_forward.1} parent=1 // pred_check_branch
      %21 = sbr.rel (0) target = $region17
    $region16: #{generator_forward.1} parent=1 // pred_region
      %s23 = ssub.s32 1024, 1024
      %24 = vsyncadd [#allocation3], %s23
      %s25 = sshll.u32 [#allocation2], 4
      %s26 = int_to_ptr.vmem [resolvable:$true] %s25
      %31 = dma.hbm_to_vmem [thread:$0]  %s3, 1024, %s26, [#allocation3], 64, 64, 4
    $region17: #{generator_forward.1} parent=1 // pred_fallthru
      _
    // Predicated region
    $region18: #{generator_forward.1} parent=1 // pred_check
      _
    $region19: #{generator_forward.1} parent=1 // pred_check_branch
      %33 = sbr.rel (0) target = $region21
    $region20: #{generator_forward.1} parent=1 // pred_region
      _
    $region21: #{generator_forward.1} parent=1 // pred_fallthru
      _
    // Predicated region
    $region22: #{generator_forward.1} parent=1 // pred_check
      _
    $region23: #{generator_forward.1} parent=1 // pred_check_branch
      %35 = sbr.rel (0) target = $region25
    $region24: #{generator_forward.1} parent=1 // pred_region
      %s37 = ssub.s32 3072, 3072
      %38 = vsyncadd [#allocation5], %s37
      %s39 = sshll.u32 [#allocation4], 4
      %s40 = int_to_ptr.vmem [resolvable:$true] %s39
      %45 = dma.hbm_to_vmem [thread:$0]  %s5, 3072, %s40, [#allocation5], 192, 192, 12
    $region25: #{generator_forward.1} parent=1 // pred_fallthru
      _
    // Predicated region
    $region26: #{generator_forward.1} parent=1 // pred_check
      _
    $region27: #{generator_forward.1} parent=1 // pred_check_branch
      %47 = sbr.rel (0) target = $region29
    $region28: #{generator_forward.1} parent=1 // pred_region
      _
    $region29: #{generator_forward.1} parent=1 // pred_fallthru
      _
    // Predicated region
    $region30: #{generator_forward.1} parent=1 // pred_check
      _
    $region31: #{generator_forward.1} parent=1 // pred_check_branch
      %49 = sbr.rel (0) target = $region33
    $region32: #{generator_forward.1} parent=1 // pred_region
      %50 = dma.done [#allocation3], 1024
    $region33: #{generator_forward.1} parent=1 // pred_fallthru
      _
    // Predicated region
    $region34: #{generator_forward.1} parent=1 // pred_check
      _
    $region35: #{generator_forward.1} parent=1 // pred_check_branch
      %52 = sbr.rel (0) target = $region37
    $region36: #{generator_forward.1} parent=1 // pred_region
      %53 = dma.done [#allocation5], 3072
    $region37: #{generator_forward.1} parent=1 // pred_fallthru
      _
    %v55 = vld [vmem:[%s0] sm:$0xf]
    %v56 = vld [vmem:[%s1] sm:$0xf]
    %v57 = vld [vmem:[%s2] sm:$0x1]
    %v59 = vlaneseq
    %v60 = vshrl.u32 %v59, 7
    %v61 = vsub.s32 0, %v60
    %v62 = vrot.slane %v57, %v61
    %vm64 = vcmask 64512
    %v66 = vsel %vm64, %v55, 0
    %vm68 = vcmask 1043456
    %v70 = vsel %vm68, %v56, 0
    %72 = vmatprep.subr.bf16.mxu0 0
    %73 = vmatpush1.bf16.msra.mxu0 %v70
    %74 = vmatprep.subr.bf16.mxu0 0
    %75 = vmatpush1.bf16.msra.mxu0 0
    %76 = vmatprep.subr.bf16.mxu0 0
    %77 = vmatpush1.bf16.msra.mxu0 0
    %78 = vmatprep.subr.bf16.mxu0 0
    %79 = vmatpush1.bf16.msra.mxu0 0
    %80 = vmatprep.subr.bf16.mxu0 0
    %81 = vmatpush1.bf16.msra.mxu0 0
    %82 = vmatprep.subr.bf16.mxu0 0
    %83 = vmatpush1.bf16.msra.mxu0 0
    %84 = vmatprep.subr.bf16.mxu0 0
    %85 = vmatpush1.bf16.msra.mxu0 0
    %86 = vmatprep.subr.bf16.mxu0 0
    %87 = vmatpush1.bf16.msra.mxu0 0
    %88 = vmatprep.subr.bf16.mxu0 0
    %89 = vmatpush1.bf16.msra.mxu0 0
    %90 = vmatprep.subr.bf16.mxu0 0
    %91 = vmatpush1.bf16.msra.mxu0 0
    %92 = vmatprep.subr.bf16.mxu0 0
    %93 = vmatpush1.bf16.msra.mxu0 0
    %94 = vmatprep.subr.bf16.mxu0 0
    %95 = vmatpush1.bf16.msra.mxu0 0
    %96 = vmatprep.subr.bf16.mxu0 0
    %97 = vmatpush1.bf16.msra.mxu0 0
    %98 = vmatprep.subr.bf16.mxu0 0
    %99 = vmatpush1.bf16.msra.mxu0 0
    %100 = vmatprep.subr.bf16.mxu0 0
    %101 = vmatpush1.bf16.msra.mxu0 0
    %102 = vmatprep.subr.bf16.mxu0 0
    %103 = vmatpush1.bf16.msra.mxu0 0
    %104 = vmatprep.mubr.bf16.mxu0 0
    %105 = vmatmul.mubr.bf16.gmra.mrb[0].mxu0 %v66
    %v106 = vpop.f32.mrb[0].mxu0
    %v107 = vadd.f32 %v62, %v106
    %v108 = vpop.f32.mrb[0].mxu0
    %v109 = vpop.f32.mrb[0].mxu0
    %v110 = vpop.f32.mrb[0].mxu0
    %111 = vdwg.mxu0
    %v112 = vtanh.pop %v107
    %v113 = vpack.c.bf16 %v112, %v112
    %v114 = vld [vmem:[#allocation2] sm:$0xf]
    %v115 = vld [vmem:[#allocation2 + $0x4] sm:$0xf]
    %v116 = vld [vmem:[#allocation2 + $0x8] sm:$0xf]
    %v117 = vld [vmem:[#allocation2 + $0xc] sm:$0xf]
    %v118 = vld [vmem:[#allocation2 + $0x10] sm:$0xf]
    %v119 = vld [vmem:[#allocation2 + $0x14] sm:$0xf]
    %v120 = vld [vmem:[#allocation2 + $0x18] sm:$0xf]
    %v121 = vld [vmem:[#allocation2 + $0x1c] sm:$0xf]
    %v122 = vld [vmem:[#allocation2 + $0x20] sm:$0xf]
    %v123 = vld [vmem:[#allocation2 + $0x24] sm:$0xf]
    %v124 = vld [vmem:[#allocation2 + $0x28] sm:$0xf]
    %v125 = vld [vmem:[#allocation2 + $0x2c] sm:$0xf]
    %v126 = vld [vmem:[#allocation2 + $0x30] sm:$0xf]
    %v127 = vld [vmem:[#allocation2 + $0x34] sm:$0xf]
    %v128 = vld [vmem:[#allocation2 + $0x38] sm:$0xf]
    %v129 = vld [vmem:[#allocation2 + $0x3c] sm:$0xf]
    %v130 = vld [vmem:[%s4] sm:$0x1]
    %v132 = vlaneseq
    %v133 = vshrl.u32 %v132, 7
    %v134 = vsub.s32 0, %v133
    %v135 = vrot.slane %v130, %v134
    %v153 = vunpack.c.l.b16 %v114
    %v154 = vunpack.c.l.b16 %v115
    %v155 = vunpack.c.l.b16 %v116
    %v156 = vunpack.c.l.b16 %v117
    %v157 = vunpack.c.l.b16 %v118
    %v158 = vunpack.c.l.b16 %v119
    %v159 = vunpack.c.l.b16 %v120
    %v160 = vunpack.c.l.b16 %v121
    %v161 = vunpack.c.l.b16 %v122
    %v162 = vunpack.c.l.b16 %v123
    %v163 = vunpack.c.l.b16 %v124
    %v164 = vunpack.c.l.b16 %v125
    %v165 = vunpack.c.l.b16 %v126
    %v166 = vunpack.c.l.b16 %v127
    %v167 = vunpack.c.l.b16 %v128
    %v168 = vunpack.c.l.b16 %v129
    %v169 = vpack.c.b16 %v154, %v153
    %v170 = vpack.c.b16 %v156, %v155
    %v171 = vpack.c.b16 %v158, %v157
    %v172 = vpack.c.b16 %v160, %v159
    %v173 = vpack.c.b16 %v162, %v161
    %v174 = vpack.c.b16 %v164, %v163
    %v175 = vpack.c.b16 %v166, %v165
    %v176 = vpack.c.b16 %v168, %v167
    %185 = vmatprep.subr.bf16.mxu0 0
    %186 = vmatpush1.bf16.msra.mxu0 %v169
    %187 = vmatprep.subr.bf16.mxu0 0
    %188 = vmatpush1.bf16.msra.mxu0 %v170
    %189 = vmatprep.subr.bf16.mxu0 0
    %190 = vmatpush1.bf16.msra.mxu0 %v171
    %191 = vmatprep.subr.bf16.mxu0 0
    %192 = vmatpush1.bf16.msra.mxu0 %v172
    %193 = vmatprep.subr.bf16.mxu0 0
    %194 = vmatpush1.bf16.msra.mxu0 %v173
    %195 = vmatprep.subr.bf16.mxu0 0
    %196 = vmatpush1.bf16.msra.mxu0 %v174
    %197 = vmatprep.subr.bf16.mxu0 0
    %198 = vmatpush1.bf16.msra.mxu0 %v175
    %199 = vmatprep.subr.bf16.mxu0 0
    %200 = vmatpush1.bf16.msra.mxu0 %v176
    %201 = vmatprep.subr.bf16.mxu0 0
    %202 = vmatpush1.bf16.msra.mxu0 0
    %203 = vmatprep.subr.bf16.mxu0 0
    %204 = vmatpush1.bf16.msra.mxu0 0
    %205 = vmatprep.subr.bf16.mxu0 0
    %206 = vmatpush1.bf16.msra.mxu0 0
    %207 = vmatprep.subr.bf16.mxu0 0
    %208 = vmatpush1.bf16.msra.mxu0 0
    %209 = vmatprep.subr.bf16.mxu0 0
    %210 = vmatpush1.bf16.msra.mxu0 0
    %211 = vmatprep.subr.bf16.mxu0 0
    %212 = vmatpush1.bf16.msra.mxu0 0
    %213 = vmatprep.subr.bf16.mxu0 0
    %214 = vmatpush1.bf16.msra.mxu0 0
    %215 = vmatprep.subr.bf16.mxu0 0
    %216 = vmatpush1.bf16.msra.mxu0 0
    %217 = vmatprep.mubr.bf16.mxu0 0
    %218 = vmatmul.mubr.bf16.gmra.mrb[0].mxu0 %v113
    %v219 = vpop.f32.mrb[0].mxu0
    %v220 = vadd.f32 %v135, %v219
    %v221 = vpop.f32.mrb[0].mxu0
    %v222 = vpop.f32.mrb[0].mxu0
    %v223 = vpop.f32.mrb[0].mxu0
    %224 = vdwg.mxu0
    %v225 = vtanh.pop %v220
    %v226 = vpack.c.bf16 %v225, %v225
    %v227 = vld [vmem:[#allocation4] sm:$0xff]
    %v228 = vld [vmem:[#allocation4 + $0x8] sm:$0xf]
    %v229 = vld [vmem:[#allocation4 + $0xc] sm:$0xff]
    %v230 = vld [vmem:[#allocation4 + $0x14] sm:$0xf]
    %v231 = vld [vmem:[#allocation4 + $0x18] sm:$0xff]
    %v232 = vld [vmem:[#allocation4 + $0x20] sm:$0xf]
    %v233 = vld [vmem:[#allocation4 + $0x24] sm:$0xff]
    %v234 = vld [vmem:[#allocation4 + $0x2c] sm:$0xf]
    %v235 = vld [vmem:[#allocation4 + $0x30] sm:$0xff]
    %v236 = vld [vmem:[#allocation4 + $0x38] sm:$0xf]
    %v237 = vld [vmem:[#allocation4 + $0x3c] sm:$0xff]
    %v238 = vld [vmem:[#allocation4 + $0x44] sm:$0xf]
    %v239 = vld [vmem:[#allocation4 + $0x48] sm:$0xff]
    %v240 = vld [vmem:[#allocation4 + $0x50] sm:$0xf]
    %v241 = vld [vmem:[#allocation4 + $0x54] sm:$0xff]
    %v242 = vld [vmem:[#allocation4 + $0x5c] sm:$0xf]
    %v243 = vld [vmem:[#allocation4 + $0x60] sm:$0xff]
    %v244 = vld [vmem:[#allocation4 + $0x68] sm:$0xf]
    %v245 = vld [vmem:[#allocation4 + $0x6c] sm:$0xff]
    %v246 = vld [vmem:[#allocation4 + $0x74] sm:$0xf]
    %v247 = vld [vmem:[#allocation4 + $0x78] sm:$0xff]
    %v248 = vld [vmem:[#allocation4 + $0x80] sm:$0xf]
    %v249 = vld [vmem:[#allocation4 + $0x84] sm:$0xff]
    %v250 = vld [vmem:[#allocation4 + $0x8c] sm:$0xf]
    %v251 = vld [vmem:[#allocation4 + $0x90] sm:$0xff]
    %v252 = vld [vmem:[#allocation4 + $0x98] sm:$0xf]
    %v253 = vld [vmem:[#allocation4 + $0x9c] sm:$0xff]
    %v254 = vld [vmem:[#allocation4 + $0xa4] sm:$0xf]
    %v255 = vld [vmem:[#allocation4 + $0xa8] sm:$0xff]
    %v256 = vld [vmem:[#allocation4 + $0xb0] sm:$0xf]
    %v257 = vld [vmem:[#allocation4 + $0xb4] sm:$0xff]
    %v258 = vld [vmem:[#allocation4 + $0xbc] sm:$0xf]
    %v259 = vld [vmem:[%s6] sm:$0x7]
    %v261 = vlaneseq
    %v262 = vshrl.u32 %v261, 7
    %v263 = vsub.s32 0, %v262
    %v264 = vrot.slane %v259, %v263
    %v265 = vlaneseq
    %v266 = vshrl.u32 %v265, 7
    %v267 = vsub.s32 1, %v266
    %v268 = vrot.slane %v259, %v267
    %v269 = vlaneseq
    %v270 = vshrl.u32 %v269, 7
    %v271 = vsub.s32 2, %v270
    %v272 = vrot.slane %v259, %v271
    %v308 = vunpack.c.l.b16 %v227
    %v309 = vunpack.c.h.b16 %v227
    %v310 = vunpack.c.l.b16 %v228
    %v311 = vunpack.c.l.b16 %v229
    %v312 = vunpack.c.h.b16 %v229
    %v313 = vunpack.c.l.b16 %v230
    %v314 = vunpack.c.l.b16 %v231
    %v315 = vunpack.c.h.b16 %v231
    %v316 = vunpack.c.l.b16 %v232
    %v317 = vunpack.c.l.b16 %v233
    %v318 = vunpack.c.h.b16 %v233
    %v319 = vunpack.c.l.b16 %v234
    %v320 = vunpack.c.l.b16 %v235
    %v321 = vunpack.c.h.b16 %v235
    %v322 = vunpack.c.l.b16 %v236
    %v323 = vunpack.c.l.b16 %v237
    %v324 = vunpack.c.h.b16 %v237
    %v325 = vunpack.c.l.b16 %v238
    %v326 = vunpack.c.l.b16 %v239
    %v327 = vunpack.c.h.b16 %v239
    %v328 = vunpack.c.l.b16 %v240
    %v329 = vunpack.c.l.b16 %v241
    %v330 = vunpack.c.h.b16 %v241
    %v331 = vunpack.c.l.b16 %v242
    %v332 = vunpack.c.l.b16 %v243
    %v333 = vunpack.c.h.b16 %v243
    %v334 = vunpack.c.l.b16 %v244
    %v335 = vunpack.c.l.b16 %v245
    %v336 = vunpack.c.h.b16 %v245
    %v337 = vunpack.c.l.b16 %v246
    %v338 = vunpack.c.l.b16 %v247
    %v339 = vunpack.c.h.b16 %v247
    %v340 = vunpack.c.l.b16 %v248
    %v341 = vunpack.c.l.b16 %v249
    %v342 = vunpack.c.h.b16 %v249
    %v343 = vunpack.c.l.b16 %v250
    %v344 = vunpack.c.l.b16 %v251
    %v345 = vunpack.c.h.b16 %v251
    %v346 = vunpack.c.l.b16 %v252
    %v347 = vunpack.c.l.b16 %v253
    %v348 = vunpack.c.h.b16 %v253
    %v349 = vunpack.c.l.b16 %v254
    %v350 = vunpack.c.l.b16 %v255
    %v351 = vunpack.c.h.b16 %v255
    %v352 = vunpack.c.l.b16 %v256
    %v353 = vunpack.c.l.b16 %v257
    %v354 = vunpack.c.h.b16 %v257
    %v355 = vunpack.c.l.b16 %v258
    %v356 = vpack.c.b16 %v311, %v308
    %v357 = vpack.c.b16 %v312, %v309
    %v358 = vpack.c.b16 %v313, %v310
    %v359 = vpack.c.b16 %v317, %v314
    %v360 = vpack.c.b16 %v318, %v315
    %v361 = vpack.c.b16 %v319, %v316
    %v362 = vpack.c.b16 %v323, %v320
    %v363 = vpack.c.b16 %v324, %v321
    %v364 = vpack.c.b16 %v325, %v322
    %v365 = vpack.c.b16 %v329, %v326
    %v366 = vpack.c.b16 %v330, %v327
    %v367 = vpack.c.b16 %v331, %v328
    %v368 = vpack.c.b16 %v335, %v332
    %v369 = vpack.c.b16 %v336, %v333
    %v370 = vpack.c.b16 %v337, %v334
    %v371 = vpack.c.b16 %v341, %v338
    %v372 = vpack.c.b16 %v342, %v339
    %v373 = vpack.c.b16 %v343, %v340
    %v374 = vpack.c.b16 %v347, %v344
    %v375 = vpack.c.b16 %v348, %v345
    %v376 = vpack.c.b16 %v349, %v346
    %v377 = vpack.c.b16 %v353, %v350
    %v378 = vpack.c.b16 %v354, %v351
    %v379 = vpack.c.b16 %v355, %v352
    %404 = vmatprep.subr.bf16.mxu0 %v357
    %405 = vmatpush1.bf16.msra.mxu0 %v356
    %406 = vmatprep.subr.bf16.mxu0 %v360
    %407 = vmatpush1.bf16.msra.mxu0 %v359
    %408 = vmatprep.subr.bf16.mxu0 %v363
    %409 = vmatpush1.bf16.msra.mxu0 %v362
    %410 = vmatprep.subr.bf16.mxu0 %v366
    %411 = vmatpush1.bf16.msra.mxu0 %v365
    %412 = vmatprep.subr.bf16.mxu0 %v369
    %413 = vmatpush1.bf16.msra.mxu0 %v368
    %414 = vmatprep.subr.bf16.mxu0 %v372
    %415 = vmatpush1.bf16.msra.mxu0 %v371
    %416 = vmatprep.subr.bf16.mxu0 %v375
    %417 = vmatpush1.bf16.msra.mxu0 %v374
    %418 = vmatprep.subr.bf16.mxu0 %v378
    %419 = vmatpush1.bf16.msra.mxu0 %v377
    %420 = vmatprep.subr.bf16.mxu0 0
    %421 = vmatpush1.bf16.msra.mxu0 0
    %422 = vmatprep.subr.bf16.mxu0 0
    %423 = vmatpush1.bf16.msra.mxu0 0
    %424 = vmatprep.subr.bf16.mxu0 0
    %425 = vmatpush1.bf16.msra.mxu0 0
    %426 = vmatprep.subr.bf16.mxu0 0
    %427 = vmatpush1.bf16.msra.mxu0 0
    %428 = vmatprep.subr.bf16.mxu0 0
    %429 = vmatpush1.bf16.msra.mxu0 0
    %430 = vmatprep.subr.bf16.mxu0 0
    %431 = vmatpush1.bf16.msra.mxu0 0
    %432 = vmatprep.subr.bf16.mxu0 0
    %433 = vmatpush1.bf16.msra.mxu0 0
    %434 = vmatprep.subr.bf16.mxu0 0
    %435 = vmatpush1.bf16.msra.mxu0 0
    %436 = vmatprep.mubr.bf16.mxu0 0
    %437 = vmatmul.mubr.bf16.gmra.mrb[0].mxu0 %v226
    %v438 = vpop.f32.mrb[0].mxu0
    %v439 = vadd.f32 %v264, %v438
    %v440 = vpop.f32.mrb[0].mxu0
    %v441 = vadd.f32 %v268, %v440
    %v442 = vpop.f32.mrb[0].mxu0
    %v443 = vpop.f32.mrb[0].mxu0
    %444 = vdwg.mxu0
    %445 = vmatprep.subr.bf16.mxu0 0
    %446 = vmatpush1.bf16.msra.mxu0 %v358
    %447 = vmatprep.subr.bf16.mxu0 0
    %448 = vmatpush1.bf16.msra.mxu0 %v361
    %449 = vmatprep.subr.bf16.mxu0 0
    %450 = vmatpush1.bf16.msra.mxu0 %v364
    %451 = vmatprep.subr.bf16.mxu0 0
    %452 = vmatpush1.bf16.msra.mxu0 %v367
    %453 = vmatprep.subr.bf16.mxu0 0
    %454 = vmatpush1.bf16.msra.mxu0 %v370
    %455 = vmatprep.subr.bf16.mxu0 0
    %456 = vmatpush1.bf16.msra.mxu0 %v373
    %457 = vmatprep.subr.bf16.mxu0 0
    %458 = vmatpush1.bf16.msra.mxu0 %v376
    %459 = vmatprep.subr.bf16.mxu0 0
    %460 = vmatpush1.bf16.msra.mxu0 %v379
    %461 = vmatprep.subr.bf16.mxu0 0
    %462 = vmatpush1.bf16.msra.mxu0 0
    %463 = vmatprep.subr.bf16.mxu0 0
    %464 = vmatpush1.bf16.msra.mxu0 0
    %465 = vmatprep.subr.bf16.mxu0 0
    %466 = vmatpush1.bf16.msra.mxu0 0
    %467 = vmatprep.subr.bf16.mxu0 0
    %468 = vmatpush1.bf16.msra.mxu0 0
    %469 = vmatprep.subr.bf16.mxu0 0
    %470 = vmatpush1.bf16.msra.mxu0 0
    %471 = vmatprep.subr.bf16.mxu0 0
    %472 = vmatpush1.bf16.msra.mxu0 0
    %473 = vmatprep.subr.bf16.mxu0 0
    %474 = vmatpush1.bf16.msra.mxu0 0
    %475 = vmatprep.subr.bf16.mxu0 0
    %476 = vmatpush1.bf16.msra.mxu0 0
    %477 = vmatprep.mubr.bf16.mxu0 0
    %478 = vmatmul.mubr.bf16.gmra.mrb[0].mxu0 %v226
    %v479 = vpop.f32.mrb[0].mxu0
    %v480 = vadd.f32 %v272, %v479
    %v481 = vpop.f32.mrb[0].mxu0
    %v482 = vpop.f32.mrb[0].mxu0
    %v483 = vpop.f32.mrb[0].mxu0
    %484 = vdwg.mxu0
    %485 = vst [vmem:[%s7] sm:$0xff] %v439
    %486 = vst [vmem:[%s7 + $0x8] sm:$0xff] %v441
    %487 = vst [vmem:[%s7 + $0x10] sm:$0xff] %v480
    // Predicated region
    $region38: #{generator_forward.1} parent=1 // pred_check
      _
    $region39: #{generator_forward.1} parent=1 // pred_check_branch
      %489 = sbr.rel (0) target = $region41
    $region40: #{generator_forward.1} parent=1 // pred_region
      _
    $region41: #{generator_forward.1} parent=1 // pred_fallthru
      _
    // Predicated region
    $region42: #{generator_forward.1} parent=1 // pred_check
      _
    $region43: #{generator_forward.1} parent=1 // pred_check_branch
      %491 = sbr.rel (0) target = $region45
    $region44: #{generator_forward.1} parent=1 // pred_region
      _
    $region45: #{generator_forward.1} parent=1 // pred_fallthru
      _
    %492 = vsyncpa [#allocation3], 1
    %493 = vsyncpa [#allocation5], 1

</llo_original>
